<compile_context>
chip_gen: v5e
topology: v5e:2x2
jax: 0.10.0
libtpu: 0.0.40
codegen_flags: <defaults>
</compile_context>

<pallas_src>
import jax
import jax.numpy as jnp
from jax.experimental import pallas as pl
from jax.experimental.pallas import tpu as pltpu

_LOG_2PI = 1.8378770664093453  # log(2*pi)


def _search_dist_forward_kernel(mu_ref, log_sigma_ref, eps_ref, xs_ref, logq_ref):
    mu = mu_ref[...]                 # (1, D), broadcast over sublanes
    log_sigma = log_sigma_ref[...]   # (1, D)
    sigma = jnp.exp(log_sigma)

    # sample(): reparameterized draw.
    eps = eps_ref[...]               # (s_blk, D) float32
    xs = mu + sigma * eps
    xs_ref[...] = xs.astype(xs_ref.dtype)

    # log_prob(Xs): z = (Xs - mu)/sigma == eps exactly, so
    #   logq = -0.5 * sum(eps^2) + C,  C = -sum(log_sigma) - 0.5*D*log(2*pi).
    d = jnp.float32(eps_ref.shape[-1])
    const = -jnp.sum(log_sigma) - 0.5 * d * jnp.float32(_LOG_2PI)
    logq = -0.5 * jnp.sum(eps * eps, axis=-1) + const          # (s_blk,)

    if logq_ref.shape[0] == 1:       # lane-dense (1, s_blk) layout
        logq_ref[...] = logq.reshape(1, -1)
    else:                            # (s_blk, 1) column layout (ragged fallback)
        logq_ref[...] = logq.reshape(-1, 1)


def _choose_s_block(samples, dim, target_bytes=4 * 1024 * 1024):
    """Pick a sample-axis block: prefer multiples of 128 dividing `samples`
    (lane-dense logq), else multiples of 8, else the whole axis. Blocks are
    capped near `target_bytes` and halved once (when possible) so the grid has
    >= 2 steps for megacore sharding."""
    target_rows = max(8, min(samples, target_bytes // (dim * 4)))
    best = None
    for step in (128, 8):
        for rows in range(step, int(target_rows) + 1, step):
            if samples % rows == 0:
                best = rows
        if best is not None:
            break
    if best is None:
        return samples
    if samples // best < 2 and (best // 2) % 8 == 0:
        best //= 2
    return best


def search_distribution_forward(mu, log_sigma, *, samples, seed=0, key=None,
                                s_block=None, xs_dtype=jnp.float32):
    """(Xs, logqX) = SearchDistribution.forward(samples) for a diagonal Gaussian q.

    mu, log_sigma : (D,) float32 variational parameters.
    samples       : number of Monte-Carlo samples S.
    seed / key    : RNG seed (or explicit jax PRNG key) for the noise draw.
    xs_dtype      : Xs output dtype (bf16 halves the dominant HBM writeback
                    if the consumer tolerates it; compute stays f32).
    """
    D = int(mu.shape[-1])
    S = int(samples)
    if s_block is None:
        s_block = _choose_s_block(S, D)
    assert S % s_block == 0, (S, s_block)
    num_blocks = S // s_block

    if key is None:
        key = jax.random.PRNGKey(seed)
    eps = jax.random.normal(key, (S, D), dtype=jnp.float32)

    mu2 = mu.reshape(1, D).astype(jnp.float32)
    ls2 = log_sigma.reshape(1, D).astype(jnp.float32)

    # logq layout: lane-dense when blocks are 128-aligned (or the whole axis).
    if (s_block % 128 == 0) or (s_block == S):
        logq_shape = (1, S)
        logq_spec = pl.BlockSpec((1, s_block), lambda i: (0, i))
    else:
        logq_shape = (S, 1)
        logq_spec = pl.BlockSpec((s_block, 1), lambda i: (i, 0))

    # Double-buffered eps + Xs blocks dominate scoped VMEM; cap at 48 MiB so the
    # same setting stays safe on v7x (64 MiB physical) while raising defaults.
    block_bytes = s_block * D * 4
    vmem_limit = int(min(48 * 1024 * 1024, max(32 * 1024 * 1024, 6 * block_bytes)))

    xs, logq = pl.pallas_call(
        _search_dist_forward_kernel,
        out_shape=(
            jax.ShapeDtypeStruct((S, D), xs_dtype),
            jax.ShapeDtypeStruct(logq_shape, jnp.float32),
        ),
        grid=(num_blocks,),
        in_specs=[
            pl.BlockSpec((1, D), lambda i: (0, 0)),         # mu (resident)
            pl.BlockSpec((1, D), lambda i: (0, 0)),         # log_sigma (resident)
            pl.BlockSpec((s_block, D), lambda i: (i, 0)),   # eps
        ],
        out_specs=(
            pl.BlockSpec((s_block, D), lambda i: (i, 0)),   # Xs
            logq_spec,                                      # logqX
        ),
        compiler_params=pltpu.CompilerParams(
            dimension_semantics=("parallel",),
            vmem_limit_bytes=vmem_limit,
        ),
    )(mu2, ls2, eps)

    return xs, logq.reshape(S)


if __name__ == "__main__":
    SAMPLES = 512      # self.samples (kept small); module default is 100
    D = 256            # search-space dimensionality (lane-aligned)

    key = jax.random.PRNGKey(0)
    k_mu, k_ls, k_eps = jax.random.split(key, 3)
    mu = jax.random.normal(k_mu, (D,), dtype=jnp.float32)
    log_sigma = 0.3 * jax.random.normal(k_ls, (D,), dtype=jnp.float32) - 0.5

    # s_block=128 -> grid=(4,): exercises the multi-step pipelined / megacore path.
    xs, logq = search_distribution_forward(mu, log_sigma, samples=SAMPLES,
                                           key=k_eps, s_block=128)
    jax.block_until_ready((xs, logq))

    assert xs.shape == (SAMPLES, D) and logq.shape == (SAMPLES,)
    assert bool(jnp.all(jnp.isfinite(xs))) and bool(jnp.all(jnp.isfinite(logq)))

    # forward() contract: logqX must equal log q(Xs) for the returned samples.
    sigma = jnp.exp(log_sigma)
    z = (xs - mu[None, :]) / sigma[None, :]
    logq_ref = jnp.sum(-0.5 * z * z - log_sigma[None, :] - 0.5 * _LOG_2PI, axis=-1)
    assert jnp.allclose(logq, logq_ref, atol=2e-2, rtol=1e-4), \
        float(jnp.max(jnp.abs(logq - logq_ref)))

    # Loose sanity check on the standard-normal noise (131k draws).
    assert abs(float(z.mean())) < 0.1
    assert 0.85 < float(z.std()) < 1.15

    # TODO(synk): clip_gradients() registers a backward grad-clamp hook; this
    # forward-only kernel has no gradient path, so it is intentionally not modeled.
    print("KERNEL_OK")
</pallas_src>

<mosaic_0001>
module attributes {stable_mosaic.version = 11 : i64} {
  func.func @_search_dist_forward_kernel(%arg0: i32, %arg1: memref<1x256xf32, #tpu.memory_space<vmem>>, %arg2: memref<1x256xf32, #tpu.memory_space<vmem>>, %arg3: memref<128x256xf32, #tpu.memory_space<vmem>>, %arg4: memref<128x256xf32, #tpu.memory_space<vmem>>, %arg5: memref<1x128xf32, #tpu.memory_space<vmem>>) attributes {dimension_semantics = [#tpu.dimension_semantics<parallel>], iteration_bounds = array<i64: 4>, scalar_prefetch = 0 : i64, scratch_operands = 0 : i64, tpu.core_type = #tpu.core_type<tc>, window_params = [{pipeline_mode = #tpu.pipeline_mode<synchronous>, transform_indices = @transform_0, window_bounds = array<i64: 1, 256>}, {pipeline_mode = #tpu.pipeline_mode<synchronous>, transform_indices = @transform_1, window_bounds = array<i64: 1, 256>}, {transform_indices = @transform_2, window_bounds = array<i64: 128, 256>}, {transform_indices = @transform_3, window_bounds = array<i64: 128, 256>}, {transform_indices = @transform_4, window_bounds = array<i64: 1, 128>}]} {
    %c0 = arith.constant 0 : index
    %c0_0 = arith.constant 0 : index
    %0 = vector.load %arg1[%c0, %c0_0] : memref<1x256xf32, #tpu.memory_space<vmem>>, vector<1x256xf32>
    %c0_1 = arith.constant 0 : index
    %c0_2 = arith.constant 0 : index
    %1 = vector.load %arg2[%c0_1, %c0_2] : memref<1x256xf32, #tpu.memory_space<vmem>>, vector<1x256xf32>
    %2 = math.exp %1 : vector<1x256xf32>
    %c0_3 = arith.constant 0 : index
    %c0_4 = arith.constant 0 : index
    %3 = vector.load %arg3[%c0_3, %c0_4] : memref<128x256xf32, #tpu.memory_space<vmem>>, vector<128x256xf32>
    %4 = vector.broadcast %2 : vector<1x256xf32> to vector<128x256xf32>
    %5 = arith.mulf %4, %3 : vector<128x256xf32>
    %6 = vector.broadcast %0 : vector<1x256xf32> to vector<128x256xf32>
    %7 = arith.addf %6, %5 : vector<128x256xf32>
    %c0_5 = arith.constant 0 : index
    %c0_6 = arith.constant 0 : index
    %8 = vector.load %arg4[%c0_5, %c0_6] : memref<128x256xf32, #tpu.memory_space<vmem>>, vector<128x256xf32>
    tpu.vector_store %arg4[%c0_5, %c0_6], %7 {strides = array<i32>} : memref<128x256xf32, #tpu.memory_space<vmem>>, vector<128x256xf32>,
    %9 = vector.shape_cast %1 : vector<1x256xf32> to vector<1x1x256xf32>
    %cst = arith.constant dense<0.000000e+00> : vector<1xf32>
    %10 = vector.multi_reduction <add>, %9, %cst [1, 2] : vector<1x1x256xf32> to vector<1xf32>
    %11 = vector.shape_cast %10 : vector<1xf32> to vector<1x1x1xf32>
    %12 = vector.extract %11[0, 0, 0] : f32 from vector<1x1x1xf32>
    %cst_7 = arith.constant 0.000000e+00 : f32
    %13 = arith.subf %cst_7, %12 : f32
    %cst_8 = arith.constant 5.000000e-01 : f32
    %cst_9 = arith.constant 2.560000e+02 : f32
    %14 = arith.mulf %cst_8, %cst_9 : f32
    %cst_10 = arith.constant 1.83787704 : f32
    %15 = arith.mulf %14, %cst_10 : f32
    %16 = arith.subf %13, %15 : f32
    %17 = arith.mulf %3, %3 : vector<128x256xf32>
    %cst_11 = arith.constant dense<0.000000e+00> : vector<128xf32>
    %18 = vector.multi_reduction <add>, %17, %cst_11 [1] : vector<128x256xf32> to vector<128xf32>
    %cst_12 = arith.constant -5.000000e-01 : f32
    %19 = vector.broadcast %cst_12 : f32 to vector<128xf32>
    %20 = arith.mulf %19, %18 : vector<128xf32>
    %21 = vector.broadcast %16 : f32 to vector<128xf32>
    %22 = arith.addf %20, %21 : vector<128xf32>
    %23 = vector.shape_cast %22 : vector<128xf32> to vector<1x128xf32>
    %c0_13 = arith.constant 0 : index
    %c0_14 = arith.constant 0 : index
    %24 = vector.load %arg5[%c0_13, %c0_14] : memref<1x128xf32, #tpu.memory_space<vmem>>, vector<1x128xf32>
    tpu.vector_store %arg5[%c0_13, %c0_14], %23 {strides = array<i32>} : memref<1x128xf32, #tpu.memory_space<vmem>>, vector<1x128xf32>,
    return
  }
  func.func @transform_0(%arg0: i32) -> (i32, i32) {
    %c0_i32 = arith.constant 0 : i32
    %c0_i32_0 = arith.constant 0 : i32
    %c0_i32_1 = arith.constant 0 : i32
    return %c0_i32, %c0_i32_0 : i32, i32
  }
  func.func @transform_1(%arg0: i32) -> (i32, i32) {
    %c0_i32 = arith.constant 0 : i32
    %c0_i32_0 = arith.constant 0 : i32
    %c0_i32_1 = arith.constant 0 : i32
    return %c0_i32, %c0_i32_0 : i32, i32
  }
  func.func @transform_2(%arg0: i32) -> (i32, i32) {
    %c0_i32 = arith.constant 0 : i32
    %c0_i32_0 = arith.constant 0 : i32
    return %arg0, %c0_i32 : i32, i32
  }
  func.func @transform_3(%arg0: i32) -> (i32, i32) {
    %c0_i32 = arith.constant 0 : i32
    %c0_i32_0 = arith.constant 0 : i32
    return %arg0, %c0_i32 : i32, i32
  }
  func.func @transform_4(%arg0: i32) -> (i32, i32) {
    %c0_i32 = arith.constant 0 : i32
    %c0_i32_0 = arith.constant 0 : i32
    return %c0_i32, %arg0 : i32, i32
  }
}

</mosaic_0001>

<llo_original>
// kernel: tpu_custom_call.1
$region0: #{tpu_custom_call.1}
  #allocation0 [shape = 'u32[]', space=smem, size = 0x4, offset = 0x4, fixed_abs, tag = 'smem constant byte address 0x4 - core index']
  #allocation1 [shape = 'u32[72,128]{1,0:T(1,128)}', space=vmem, size = 0x9000, scoped, tag = 'internal scratch']
  %s0 = inlined_call_operand.hbm [shape: f32[1,256], index: 0, kind: input, shape index: {}]
  %s1 = inlined_call_operand.hbm [shape: f32[1,256], index: 1, kind: input, shape index: {}]
  %s2 = inlined_call_operand.hbm [shape: f32[512,256], index: 2, kind: input, shape index: {}]
  %s3 = inlined_call_operand.hbm [shape: f32[512,256], index: 3, kind: output, shape index: {0}]
  %s4 = inlined_call_operand.hbm [shape: f32[1,512], index: 4, kind: output, shape index: {1}]
  %5 = xla_tuple %s3, %s4
  %s6 = sld [smem:[#allocation0]]
  $region65: #{tpu_custom_call.1} parent=0
    _
  %s8 = ssub.s32 1, %s6
  %s9 = scalar_select 0, %s8, %s6
  $region1: #{tpu_custom_call.1} parent=0
    #allocation2 [shape = 'u8[1024]{0}', space=vmem, size = 0x400, scoped, tag = 'input window, operand 0, single buffered']
    #allocation3 [shape = 's32[2]{0}', space=sflag, size = 0x8, scoped, tag = 'scoped memory for tpu_custom_call.1']
    #allocation4 [shape = 's32[2]{0}', space=sflag, size = 0x8, scoped, tag = 'scoped memory for tpu_custom_call.1']
    #allocation5 [shape = 'u8[1024]{0}', space=vmem, size = 0x400, scoped, tag = 'input window, operand 1, single buffered']
    #allocation6 [shape = 's32[1]{0}', space=sflag, size = 0x4, scoped, tag = 'scoped memory for tpu_custom_call.1']
    #allocation7 [shape = 'u8[262144]{0}', space=vmem, size = 0x40000, scoped, tag = 'input window, operand 2']
    #allocation8 [shape = 'u8[262144]{0}', space=vmem, size = 0x40000, scoped, tag = 'output window, operand 0']
    #allocation9 [shape = 'u8[1024]{0}', space=vmem, size = 0x400, scoped, tag = 'output window, operand 1']
    #allocation10 [shape = 's32[2]{0}', space=sflag, size = 0x8, scoped, tag = 'scoped memory for tpu_custom_call.1']
    %10 = vsyncpa [#allocation3], 0
    %11 = vsyncpa [#allocation6], 0
    %12 = vsyncpa [#allocation4], 0
    %s13 = scalar_lea.sflag [#allocation4], 1
    %14 = vsyncpa %s13, 0
    %15 = vsyncpa [#allocation10], 0
    %s16 = scalar_lea.sflag [#allocation10], 1
    %17 = vsyncpa %s16, 0
    loop: start=0, step=1, limit=6
    $region2: #{tpu_custom_call.1} parent=1 // loop_pre_header
      _
    $region3: #{tpu_custom_call.1} parent=1 // loop_header
      %s19 = sphi 0, %s23
      %p20 = scmp.ge.s32.totalorder %s19, 6
      %s27 = sphi 0, %s27
      %s29 = sphi 0, %s27
      %s30 = sphi 0, %s29
      %s44 = sphi 0, %s30
      %s48 = sphi 0, %s48
      %s50 = sphi 0, %s48
      %s51 = sphi 0, %s50
      %s65 = sphi 0, %s51
      %s71 = sphi 0, %s73
      %s74 = sphi 0, %s71
      %s75 = sphi 0, %s74
      %s91 = sphi 0, %s75
      %s97 = sphi 0, %s99
      %s100 = sphi 0, %s97
      %s101 = sphi 0, %s100
      %s117 = sphi 0, %s101
      %s123 = sphi 0, %s125
      %s126 = sphi 0, %s123
      %s127 = sphi 0, %s126
      %s143 = sphi 0, %s127
    $region4: #{tpu_custom_call.1} parent=1 // loop_header_branch
      %22 = sbr.rel (%p20) target = $region8
    $region5: #{tpu_custom_call.1} parent=1 // loop_body
      %s24 = ssub.s32 %s19, 1
      %s25 = ssub.s32 %s19, 2
      %s26 = sadd.s32 %s19, 1
      %s28 = sadd.s32 %s27, 1
      %p31 = scmp.eq.s32.totalorder %s19, 3
      %p32 = scmp.ne.s32.totalorder %s27, %s29
      %p33 = scmp.eq.s32.totalorder %s19, 0
      %p34 = por %p32, %p33
      %p35 = scmp.ne.s32.totalorder %s27, %s29
      %p36 = scmp.eq.s32.totalorder %s24, 3
      %p37 = por %p35, %p36
      %p38 = scmp.ne.s32.totalorder %s29, %s30
      %p39 = scmp.eq.s32.totalorder %s24, 0
      %p40 = por %p38, %p39
      %p41 = scmp.ne.s32.totalorder %s29, %s30
      %p42 = scmp.eq.s32.totalorder %s25, 3
      %p43 = por %p41, %p42
      %p45 = scmp.ne.s32.totalorder %s30, %s44
      %p46 = scmp.eq.s32.totalorder %s25, 0
      %p47 = por %p45, %p46
      %s49 = sadd.s32 %s48, 1
      %p52 = scmp.eq.s32.totalorder %s19, 3
      %p53 = scmp.ne.s32.totalorder %s48, %s50
      %p54 = scmp.eq.s32.totalorder %s19, 0
      %p55 = por %p53, %p54
      %p56 = scmp.ne.s32.totalorder %s48, %s50
      %p57 = scmp.eq.s32.totalorder %s24, 3
      %p58 = por %p56, %p57
      %p59 = scmp.ne.s32.totalorder %s50, %s51
      %p60 = scmp.eq.s32.totalorder %s24, 0
      %p61 = por %p59, %p60
      %p62 = scmp.ne.s32.totalorder %s50, %s51
      %p63 = scmp.eq.s32.totalorder %s25, 3
      %p64 = por %p62, %p63
      %p66 = scmp.ne.s32.totalorder %s51, %s65
      %p67 = scmp.eq.s32.totalorder %s25, 0
      %p68 = por %p66, %p67
      %s69 = ssub.s32 %s19, %s26
      %p70 = scmp.eq.s32.totalorder %s69, 0
      %s72 = sadd.s32 %s71, 1
      %s73 = scalar_select %p70, %s71, %s72
      %p76 = pneg %p70
      %p77 = scmp.eq.s32.totalorder %s19, 3
      %p78 = por %p76, %p77
      %p79 = scmp.ne.s32.totalorder %s71, %s74
      %p80 = scmp.eq.s32.totalorder %s19, 0
      %p81 = por %p79, %p80
      %p82 = scmp.ne.s32.totalorder %s71, %s74
      %p83 = scmp.eq.s32.totalorder %s24, 3
      %p84 = por %p82, %p83
      %p85 = scmp.ne.s32.totalorder %s74, %s75
      %p86 = scmp.eq.s32.totalorder %s24, 0
      %p87 = por %p85, %p86
      %p88 = scmp.ne.s32.totalorder %s74, %s75
      %p89 = scmp.eq.s32.totalorder %s25, 3
      %p90 = por %p88, %p89
      %p92 = scmp.ne.s32.totalorder %s75, %s91
      %p93 = scmp.eq.s32.totalorder %s25, 0
      %p94 = por %p92, %p93
      %s95 = ssub.s32 %s19, %s26
      %p96 = scmp.eq.s32.totalorder %s95, 0
      %s98 = sadd.s32 %s97, 1
      %s99 = scalar_select %p96, %s97, %s98
      %p102 = pneg %p96
      %p103 = scmp.eq.s32.totalorder %s19, 3
      %p104 = por %p102, %p103
      %p105 = scmp.ne.s32.totalorder %s97, %s100
      %p106 = scmp.eq.s32.totalorder %s19, 0
      %p107 = por %p105, %p106
      %p108 = scmp.ne.s32.totalorder %s97, %s100
      %p109 = scmp.eq.s32.totalorder %s24, 3
      %p110 = por %p108, %p109
      %p111 = scmp.ne.s32.totalorder %s100, %s101
      %p112 = scmp.eq.s32.totalorder %s24, 0
      %p113 = por %p111, %p112
      %p114 = scmp.ne.s32.totalorder %s100, %s101
      %p115 = scmp.eq.s32.totalorder %s25, 3
      %p116 = por %p114, %p115
      %p118 = scmp.ne.s32.totalorder %s101, %s117
      %p119 = scmp.eq.s32.totalorder %s25, 0
      %p120 = por %p118, %p119
      %s121 = ssub.s32 %s19, %s26
      %p122 = scmp.eq.s32.totalorder %s121, 0
      %s124 = sadd.s32 %s123, 1
      %s125 = scalar_select %p122, %s123, %s124
      %p128 = pneg %p122
      %p129 = scmp.eq.s32.totalorder %s19, 3
      %p130 = por %p128, %p129
      %p131 = scmp.ne.s32.totalorder %s123, %s126
      %p132 = scmp.eq.s32.totalorder %s19, 0
      %p133 = por %p131, %p132
      %p134 = scmp.ne.s32.totalorder %s123, %s126
      %p135 = scmp.eq.s32.totalorder %s24, 3
      %p136 = por %p134, %p135
      %p137 = scmp.ne.s32.totalorder %s126, %s127
      %p138 = scmp.eq.s32.totalorder %s24, 0
      %p139 = por %p137, %p138
      %p140 = scmp.ne.s32.totalorder %s126, %s127
      %p141 = scmp.eq.s32.totalorder %s25, 3
      %p142 = por %p140, %p141
      %p144 = scmp.ne.s32.totalorder %s127, %s143
      %p145 = scmp.eq.s32.totalorder %s25, 0
      %p146 = por %p144, %p145
      %p147 = scmp.le.s32.totalorder 1, %s19
      %p148 = scmp.lt.s32.totalorder %s19, 5
      %p149 = pnand %p147, %p148
      %p150 = pneg %p149
      // Predicated region
      $region9: #{tpu_custom_call.1} parent=5 // pred_check
        _
      $region10: #{tpu_custom_call.1} parent=5 // pred_check_branch
        %152 = sbr.rel (%p149) target = $region12
      $region11: #{tpu_custom_call.1} parent=5 // pred_region
        %s153 = ssub.s32 %s19, 1
        // Predicated region
        $region13: #{tpu_custom_call.1} parent=11 // pred_check
          %p154 = pneg %p40
        $region14: #{tpu_custom_call.1} parent=11 // pred_check_branch
          %156 = sbr.rel (%p154) target = $region16
        $region15: #{tpu_custom_call.1} parent=11 // pred_region
          %158 = vsyncadd [#allocation3], 0
          %s160 = sshll.u32 %s0, 4
          %s161 = int_to_ptr.hbm [resolvable:$true] %s160
          %s162 = sshll.u32 [#allocation2], 4
          %s163 = int_to_ptr.vmem [resolvable:$true] %s162
          %165 = dma.hbm_to_vmem [thread:$0]  %s161, 32, %s163, [#allocation3]
        $region16: #{tpu_custom_call.1} parent=11 // pred_fallthru
          _
        // Predicated region
        $region17: #{tpu_custom_call.1} parent=11 // pred_check
          %p166 = pneg %p61
        $region18: #{tpu_custom_call.1} parent=11 // pred_check_branch
          %168 = sbr.rel (%p166) target = $region20
        $region19: #{tpu_custom_call.1} parent=11 // pred_region
          %170 = vsyncadd [#allocation6], 0
          %s172 = sshll.u32 %s1, 4
          %s173 = int_to_ptr.hbm [resolvable:$true] %s172
          %s174 = sshll.u32 [#allocation5], 4
          %s175 = int_to_ptr.vmem [resolvable:$true] %s174
          %177 = dma.hbm_to_vmem [thread:$0]  %s173, 32, %s175, [#allocation6]
        $region20: #{tpu_custom_call.1} parent=11 // pred_fallthru
          _
      $region12: #{tpu_custom_call.1} parent=5 // pred_fallthru
        _
      %p178 = scmp.lt.s32.totalorder %s19, 4
      // Predicated region
      $region21: #{tpu_custom_call.1} parent=5 // pred_check
        %p179 = pneg %p178
      $region22: #{tpu_custom_call.1} parent=5 // pred_check_branch
        %181 = sbr.rel (%p179) target = $region24
      $region23: #{tpu_custom_call.1} parent=5 // pred_region
        // Predicated region
        $region25: #{tpu_custom_call.1} parent=23 // pred_check
          %p182 = pneg %p81
        $region26: #{tpu_custom_call.1} parent=23 // pred_check_branch
          %184 = sbr.rel (%p182) target = $region28
        $region27: #{tpu_custom_call.1} parent=23 // pred_region
          %s185 = sand.u32 %s19, 1
          %s186 = scalar_lea.sflag [#allocation3], %s185
          %s187 = sand.u32 %s71, 1
          %s188 = smul.addr %s187, 256
          %s189 = scalar_lea.vmem [#allocation7], %s188
          %s190 = smul.u32 16, %s19
          %192 = vsyncadd %s186, 0
          %s193 = smul.addr %s190, 2
          %s194 = smul.addr %s193, 8
          %s195 = scalar_lea.hbm %s2, %s194
          %s196 = sshll.u32 %s195, 4
          %s197 = int_to_ptr.hbm [resolvable:$true] %s196
          %s198 = sshll.u32 %s189, 4
          %s199 = int_to_ptr.vmem [resolvable:$true] %s198
          %204 = dma.hbm_to_vmem [thread:$0]  %s197, 4096, %s199, %s186, 256, 256, 16
        $region28: #{tpu_custom_call.1} parent=23 // pred_fallthru
          _
      $region24: #{tpu_custom_call.1} parent=5 // pred_fallthru
        _
      %p205 = scmp.le.s32.totalorder 1, %s19
      %p206 = scmp.lt.s32.totalorder %s19, 5
      %p207 = pnand %p205, %p206
      %p208 = pneg %p207
      // Predicated region
      $region29: #{tpu_custom_call.1} parent=5 // pred_check
        _
      $region30: #{tpu_custom_call.1} parent=5 // pred_check_branch
        %210 = sbr.rel (%p207) target = $region32
      $region31: #{tpu_custom_call.1} parent=5 // pred_region
        %s211 = ssub.s32 %s19, 1
        // Predicated region
        $region33: #{tpu_custom_call.1} parent=31 // pred_check
          %p212 = pneg %p40
        $region34: #{tpu_custom_call.1} parent=31 // pred_check_branch
          %214 = sbr.rel (%p212) target = $region36
        $region35: #{tpu_custom_call.1} parent=31 // pred_region
          %216 = dma.done [#allocation3], 32
        $region36: #{tpu_custom_call.1} parent=31 // pred_fallthru
          _
        // Predicated region
        $region37: #{tpu_custom_call.1} parent=31 // pred_check
          %p217 = pneg %p61
        $region38: #{tpu_custom_call.1} parent=31 // pred_check_branch
          %219 = sbr.rel (%p217) target = $region40
        $region39: #{tpu_custom_call.1} parent=31 // pred_region
          %221 = dma.done [#allocation6], 32
        $region40: #{tpu_custom_call.1} parent=31 // pred_fallthru
          _
        %s222 = sand.u32 %s24, 1
        %s223 = scalar_lea.sflag [#allocation3], %s222
        %s224 = sand.u32 %s74, 1
        %s225 = smul.addr %s224, 256
        %s226 = scalar_lea.vmem [#allocation7], %s225
        // Predicated region
        $region41: #{tpu_custom_call.1} parent=31 // pred_check
          %p227 = pneg %p87
        $region42: #{tpu_custom_call.1} parent=31 // pred_check_branch
          %229 = sbr.rel (%p227) target = $region44
        $region43: #{tpu_custom_call.1} parent=31 // pred_region
          %231 = dma.done %s223, 4096
        $region44: #{tpu_custom_call.1} parent=31 // pred_fallthru
          _
        %p232 = pneg %p40
        %p233 = pneg %p37
        %p234 = pneg %p61
        %p235 = pneg %p58
        %s236 = sand.u32 %s24, 1
        %s237 = scalar_lea.sflag [#allocation3], %s236
        %s238 = sand.u32 %s74, 1
        %s239 = smul.addr %s238, 256
        %s240 = scalar_lea.vmem [#allocation7], %s239
        %p241 = pneg %p87
        %p242 = pneg %p84
        %p243 = pneg %p113
        %p244 = pneg %p110
        %s245 = sand.u32 %s100, 1
        %s246 = scalar_lea.sflag [#allocation4], %s245
        %s247 = sand.u32 %s100, 1
        %s248 = smul.addr %s247, 256
        %s249 = scalar_lea.vmem [#allocation8], %s248
        %p250 = pneg %p139
        %p251 = pneg %p136
        %s252 = sand.u32 %s126, 1
        %s253 = scalar_lea.sflag [#allocation10], %s252
        %s254 = sand.u32 %s126, 1
        %s255 = scalar_lea.vmem [#allocation9], %s254
        %s256 = smul.u32 16, %s24
        %s257 = smul.u32 16, %s24
        %v258 = vld [vmem:[#allocation2] sm:$0x3]
        %v259 = vld [vmem:[#allocation5] sm:$0x3]
        %v260 = vmul.f32 %v259, 1.442695
        %v261 = vpow.pop %v260
        %v262 = vld [vmem:[%s226] sm:$0xff]
        %v263 = vld [vmem:[%s226 + $0x8] sm:$0xff]
        %v264 = vld [vmem:[%s226 + $0x10] sm:$0xff]
        %v265 = vld [vmem:[%s226 + $0x18] sm:$0xff]
        %v266 = vld [vmem:[%s226 + $0x20] sm:$0xff]
        %v267 = vld [vmem:[%s226 + $0x28] sm:$0xff]
        %v268 = vld [vmem:[%s226 + $0x30] sm:$0xff]
        %v269 = vld [vmem:[%s226 + $0x38] sm:$0xff]
        %v270 = vld [vmem:[%s226 + $0x40] sm:$0xff]
        %v271 = vld [vmem:[%s226 + $0x48] sm:$0xff]
        %v272 = vld [vmem:[%s226 + $0x50] sm:$0xff]
        %v273 = vld [vmem:[%s226 + $0x58] sm:$0xff]
        %v274 = vld [vmem:[%s226 + $0x60] sm:$0xff]
        %v275 = vld [vmem:[%s226 + $0x68] sm:$0xff]
        %v276 = vld [vmem:[%s226 + $0x70] sm:$0xff]
        %v277 = vld [vmem:[%s226 + $0x78] sm:$0xff]
        %v278 = vld [vmem:[%s226 + $0x80] sm:$0xff]
        %v279 = vld [vmem:[%s226 + $0x88] sm:$0xff]
        %v280 = vld [vmem:[%s226 + $0x90] sm:$0xff]
        %v281 = vld [vmem:[%s226 + $0x98] sm:$0xff]
        %v282 = vld [vmem:[%s226 + $0xa0] sm:$0xff]
        %v283 = vld [vmem:[%s226 + $0xa8] sm:$0xff]
        %v284 = vld [vmem:[%s226 + $0xb0] sm:$0xff]
        %v285 = vld [vmem:[%s226 + $0xb8] sm:$0xff]
        %v286 = vld [vmem:[%s226 + $0xc0] sm:$0xff]
        %v287 = vld [vmem:[%s226 + $0xc8] sm:$0xff]
        %v288 = vld [vmem:[%s226 + $0xd0] sm:$0xff]
        %v289 = vld [vmem:[%s226 + $0xd8] sm:$0xff]
        %v290 = vld [vmem:[%s226 + $0xe0] sm:$0xff]
        %v291 = vld [vmem:[%s226 + $0xe8] sm:$0xff]
        %v292 = vld [vmem:[%s226 + $0xf0] sm:$0xff]
        %v293 = vld [vmem:[%s226 + $0xf8] sm:$0xff]
        %v295 = vperm.slane %v261, 0
        %v296 = vperm.slane %v261, 1
        %v299 = vmul.f32 %v295, %v262
        %v300 = vmul.f32 %v296, %v263
        %v301 = vmul.f32 %v295, %v264
        %v302 = vmul.f32 %v296, %v265
        %v303 = vmul.f32 %v295, %v266
        %v304 = vmul.f32 %v296, %v267
        %v305 = vmul.f32 %v295, %v268
        %v306 = vmul.f32 %v296, %v269
        %v307 = vmul.f32 %v295, %v270
        %v308 = vmul.f32 %v296, %v271
        %v309 = vmul.f32 %v295, %v272
        %v310 = vmul.f32 %v296, %v273
        %v311 = vmul.f32 %v295, %v274
        %v312 = vmul.f32 %v296, %v275
        %v313 = vmul.f32 %v295, %v276
        %v314 = vmul.f32 %v296, %v277
        %v315 = vmul.f32 %v295, %v278
        %v316 = vmul.f32 %v296, %v279
        %v317 = vmul.f32 %v295, %v280
        %v318 = vmul.f32 %v296, %v281
        %v319 = vmul.f32 %v295, %v282
        %v320 = vmul.f32 %v296, %v283
        %v321 = vmul.f32 %v295, %v284
        %v322 = vmul.f32 %v296, %v285
        %v323 = vmul.f32 %v295, %v286
        %v324 = vmul.f32 %v296, %v287
        %v325 = vmul.f32 %v295, %v288
        %v326 = vmul.f32 %v296, %v289
        %v327 = vmul.f32 %v295, %v290
        %v328 = vmul.f32 %v296, %v291
        %v329 = vmul.f32 %v295, %v292
        %v330 = vmul.f32 %v296, %v293
        %v332 = vperm.slane %v258, 0
        %v333 = vperm.slane %v258, 1
        %v336 = vadd.f32 %v332, %v299
        %v337 = vadd.f32 %v333, %v300
        %v338 = vadd.f32 %v332, %v301
        %v339 = vadd.f32 %v333, %v302
        %v340 = vadd.f32 %v332, %v303
        %v341 = vadd.f32 %v333, %v304
        %v342 = vadd.f32 %v332, %v305
        %v343 = vadd.f32 %v333, %v306
        %v344 = vadd.f32 %v332, %v307
        %v345 = vadd.f32 %v333, %v308
        %v346 = vadd.f32 %v332, %v309
        %v347 = vadd.f32 %v333, %v310
        %v348 = vadd.f32 %v332, %v311
        %v349 = vadd.f32 %v333, %v312
        %v350 = vadd.f32 %v332, %v313
        %v351 = vadd.f32 %v333, %v314
        %v352 = vadd.f32 %v332, %v315
        %v353 = vadd.f32 %v333, %v316
        %v354 = vadd.f32 %v332, %v317
        %v355 = vadd.f32 %v333, %v318
        %v356 = vadd.f32 %v332, %v319
        %v357 = vadd.f32 %v333, %v320
        %v358 = vadd.f32 %v332, %v321
        %v359 = vadd.f32 %v333, %v322
        %v360 = vadd.f32 %v332, %v323
        %v361 = vadd.f32 %v333, %v324
        %v362 = vadd.f32 %v332, %v325
        %v363 = vadd.f32 %v333, %v326
        %v364 = vadd.f32 %v332, %v327
        %v365 = vadd.f32 %v333, %v328
        %v366 = vadd.f32 %v332, %v329
        %v367 = vadd.f32 %v333, %v330
        %368 = vst [vmem:[%s249] sm:$0xff] %v336
        %369 = vst [vmem:[%s249 + $0x8] sm:$0xff] %v337
        %370 = vst [vmem:[%s249 + $0x10] sm:$0xff] %v338
        %371 = vst [vmem:[%s249 + $0x18] sm:$0xff] %v339
        %372 = vst [vmem:[%s249 + $0x20] sm:$0xff] %v340
        %373 = vst [vmem:[%s249 + $0x28] sm:$0xff] %v341
        %374 = vst [vmem:[%s249 + $0x30] sm:$0xff] %v342
        %375 = vst [vmem:[%s249 + $0x38] sm:$0xff] %v343
        %376 = vst [vmem:[%s249 + $0x40] sm:$0xff] %v344
        %377 = vst [vmem:[%s249 + $0x48] sm:$0xff] %v345
        %378 = vst [vmem:[%s249 + $0x50] sm:$0xff] %v346
        %379 = vst [vmem:[%s249 + $0x58] sm:$0xff] %v347
        %380 = vst [vmem:[%s249 + $0x60] sm:$0xff] %v348
        %381 = vst [vmem:[%s249 + $0x68] sm:$0xff] %v349
        %382 = vst [vmem:[%s249 + $0x70] sm:$0xff] %v350
        %383 = vst [vmem:[%s249 + $0x78] sm:$0xff] %v351
        %384 = vst [vmem:[%s249 + $0x80] sm:$0xff] %v352
        %385 = vst [vmem:[%s249 + $0x88] sm:$0xff] %v353
        %386 = vst [vmem:[%s249 + $0x90] sm:$0xff] %v354
        %387 = vst [vmem:[%s249 + $0x98] sm:$0xff] %v355
        %388 = vst [vmem:[%s249 + $0xa0] sm:$0xff] %v356
        %389 = vst [vmem:[%s249 + $0xa8] sm:$0xff] %v357
        %390 = vst [vmem:[%s249 + $0xb0] sm:$0xff] %v358
        %391 = vst [vmem:[%s249 + $0xb8] sm:$0xff] %v359
        %392 = vst [vmem:[%s249 + $0xc0] sm:$0xff] %v360
        %393 = vst [vmem:[%s249 + $0xc8] sm:$0xff] %v361
        %394 = vst [vmem:[%s249 + $0xd0] sm:$0xff] %v362
        %395 = vst [vmem:[%s249 + $0xd8] sm:$0xff] %v363
        %396 = vst [vmem:[%s249 + $0xe0] sm:$0xff] %v364
        %397 = vst [vmem:[%s249 + $0xe8] sm:$0xff] %v365
        %398 = vst [vmem:[%s249 + $0xf0] sm:$0xff] %v366
        %399 = vst [vmem:[%s249 + $0xf8] sm:$0xff] %v367
        %v401 = vperm.slane %v259, 0
        %v402 = vperm.slane %v259, 1
        %vm405 = vcmask 1040384
        %v406 = vsel %vm405, %v401, 0.0
        %v407 = vsel %vm405, %v402, 0.0
        %v408 = vadd.f32 %v406, %v407
        %409 = vadd.xlane.f32.xlu0 %v408
        %v410 = vpop.xlane.xlu0 %409
        %v411 = vrot.slane %v410, 4
        %v412 = vadd.f32 %v410, %v411
        %v413 = vrot.slane %v412, 2
        %v414 = vadd.f32 %v412, %v413
        %v415 = vrot.slane %v414, 1
        %v416 = vadd.f32 %v414, %v415
        %s417 = vtos %v416
        %s418 = ssub.f32 0.0, %s417
        %s419 = ssub.f32 %s418, 235.24826
        %v420 = vmul.f32 %v262, %v262
        %v421 = vmul.f32 %v263, %v263
        %v422 = vmul.f32 %v264, %v264
        %v423 = vmul.f32 %v265, %v265
        %v424 = vmul.f32 %v266, %v266
        %v425 = vmul.f32 %v267, %v267
        %v426 = vmul.f32 %v268, %v268
        %v427 = vmul.f32 %v269, %v269
        %v428 = vmul.f32 %v270, %v270
        %v429 = vmul.f32 %v271, %v271
        %v430 = vmul.f32 %v272, %v272
        %v431 = vmul.f32 %v273, %v273
        %v432 = vmul.f32 %v274, %v274
        %v433 = vmul.f32 %v275, %v275
        %v434 = vmul.f32 %v276, %v276
        %v435 = vmul.f32 %v277, %v277
        %v436 = vmul.f32 %v278, %v278
        %v437 = vmul.f32 %v279, %v279
        %v438 = vmul.f32 %v280, %v280
        %v439 = vmul.f32 %v281, %v281
        %v440 = vmul.f32 %v282, %v282
        %v441 = vmul.f32 %v283, %v283
        %v442 = vmul.f32 %v284, %v284
        %v443 = vmul.f32 %v285, %v285
        %v444 = vmul.f32 %v286, %v286
        %v445 = vmul.f32 %v287, %v287
        %v446 = vmul.f32 %v288, %v288
        %v447 = vmul.f32 %v289, %v289
        %v448 = vmul.f32 %v290, %v290
        %v449 = vmul.f32 %v291, %v291
        %v450 = vmul.f32 %v292, %v292
        %v451 = vmul.f32 %v293, %v293
        %v452 = vadd.f32 %v420, %v421
        %453 = vadd.xlane.f32.xlu0 %v452
        %v454 = vpop.xlane.xlu0 %453
        %v455 = vadd.f32 %v422, %v423
        %456 = vadd.xlane.f32.xlu0 %v455
        %v457 = vpop.xlane.xlu0 %456
        %v458 = vadd.f32 %v424, %v425
        %459 = vadd.xlane.f32.xlu0 %v458
        %v460 = vpop.xlane.xlu0 %459
        %v461 = vadd.f32 %v426, %v427
        %462 = vadd.xlane.f32.xlu0 %v461
        %v463 = vpop.xlane.xlu0 %462
        %v464 = vadd.f32 %v428, %v429
        %465 = vadd.xlane.f32.xlu0 %v464
        %v466 = vpop.xlane.xlu0 %465
        %v467 = vadd.f32 %v430, %v431
        %468 = vadd.xlane.f32.xlu0 %v467
        %v469 = vpop.xlane.xlu0 %468
        %v470 = vadd.f32 %v432, %v433
        %471 = vadd.xlane.f32.xlu0 %v470
        %v472 = vpop.xlane.xlu0 %471
        %v473 = vadd.f32 %v434, %v435
        %474 = vadd.xlane.f32.xlu0 %v473
        %v475 = vpop.xlane.xlu0 %474
        %v476 = vadd.f32 %v436, %v437
        %477 = vadd.xlane.f32.xlu0 %v476
        %v478 = vpop.xlane.xlu0 %477
        %v479 = vadd.f32 %v438, %v439
        %480 = vadd.xlane.f32.xlu0 %v479
        %v481 = vpop.xlane.xlu0 %480
        %v482 = vadd.f32 %v440, %v441
        %483 = vadd.xlane.f32.xlu0 %v482
        %v484 = vpop.xlane.xlu0 %483
        %v485 = vadd.f32 %v442, %v443
        %486 = vadd.xlane.f32.xlu0 %v485
        %v487 = vpop.xlane.xlu0 %486
        %v488 = vadd.f32 %v444, %v445
        %489 = vadd.xlane.f32.xlu0 %v488
        %v490 = vpop.xlane.xlu0 %489
        %v491 = vadd.f32 %v446, %v447
        %492 = vadd.xlane.f32.xlu0 %v491
        %v493 = vpop.xlane.xlu0 %492
        %v494 = vadd.f32 %v448, %v449
        %495 = vadd.xlane.f32.xlu0 %v494
        %v496 = vpop.xlane.xlu0 %495
        %v497 = vadd.f32 %v450, %v451
        %498 = vadd.xlane.f32.xlu0 %v497
        %v499 = vpop.xlane.xlu0 %498
        %v500 = vmul.f32 %v454, -0.5
        %v501 = vmul.f32 %v457, -0.5
        %v502 = vmul.f32 %v460, -0.5
        %v503 = vmul.f32 %v463, -0.5
        %v504 = vmul.f32 %v466, -0.5
        %v505 = vmul.f32 %v469, -0.5
        %v506 = vmul.f32 %v472, -0.5
        %v507 = vmul.f32 %v475, -0.5
        %v508 = vmul.f32 %v478, -0.5
        %v509 = vmul.f32 %v481, -0.5
        %v510 = vmul.f32 %v484, -0.5
        %v511 = vmul.f32 %v487, -0.5
        %v512 = vmul.f32 %v490, -0.5
        %v513 = vmul.f32 %v493, -0.5
        %v514 = vmul.f32 %v496, -0.5
        %v515 = vmul.f32 %v499, -0.5
        %v516 = vstv %s419
        %v517 = vadd.f32 %v500, %v516
        %v518 = vadd.f32 %v501, %v516
        %v519 = vadd.f32 %v502, %v516
        %v520 = vadd.f32 %v503, %v516
        %v521 = vadd.f32 %v504, %v516
        %v522 = vadd.f32 %v505, %v516
        %v523 = vadd.f32 %v506, %v516
        %v524 = vadd.f32 %v507, %v516
        %v525 = vadd.f32 %v508, %v516
        %v526 = vadd.f32 %v509, %v516
        %v527 = vadd.f32 %v510, %v516
        %v528 = vadd.f32 %v511, %v516
        %v529 = vadd.f32 %v512, %v516
        %v530 = vadd.f32 %v513, %v516
        %v531 = vadd.f32 %v514, %v516
        %v532 = vadd.f32 %v515, %v516
        %v549 = vlaneseq
        %v550 = vand.u32 %v549, 127
        %v551 = vperm.slane %v517, %v550
        %v552 = vadd.s32 %v550, 4294967288
        %v553 = vperm.slane %v518, %v552
        %vm554 = vcmask 130112
        %v555 = vsel %vm554, %v553, %v551
        %v556 = vadd.s32 %v550, 4294967280
        %v557 = vperm.slane %v519, %v556
        %vm558 = vcmask 195712
        %v559 = vsel %vm558, %v557, %v555
        %v560 = vadd.s32 %v550, 4294967272
        %v561 = vperm.slane %v520, %v560
        %vm562 = vcmask 261312
        %v563 = vsel %vm562, %v561, %v559
        %v564 = vadd.s32 %v550, 4294967264
        %v565 = vperm.slane %v521, %v564
        %vm566 = vcmask 326912
        %v567 = vsel %vm566, %v565, %v563
        %v568 = vadd.s32 %v550, 4294967256
        %v569 = vperm.slane %v522, %v568
        %vm570 = vcmask 392512
        %v571 = vsel %vm570, %v569, %v567
        %v572 = vadd.s32 %v550, 4294967248
        %v573 = vperm.slane %v523, %v572
        %vm574 = vcmask 458112
        %v575 = vsel %vm574, %v573, %v571
        %v576 = vadd.s32 %v550, 4294967240
        %v577 = vperm.slane %v524, %v576
        %vm578 = vcmask 523712
        %v579 = vsel %vm578, %v577, %v575
        %v580 = vadd.s32 %v550, 4294967232
        %v581 = vperm.slane %v525, %v580
        %vm582 = vcmask 589312
        %v583 = vsel %vm582, %v581, %v579
        %v584 = vadd.s32 %v550, 4294967224
        %v585 = vperm.slane %v526, %v584
        %vm586 = vcmask 654912
        %v587 = vsel %vm586, %v585, %v583
        %v588 = vadd.s32 %v550, 4294967216
        %v589 = vperm.slane %v527, %v588
        %vm590 = vcmask 720512
        %v591 = vsel %vm590, %v589, %v587
        %v592 = vadd.s32 %v550, 4294967208
        %v593 = vperm.slane %v528, %v592
        %vm594 = vcmask 786112
        %v595 = vsel %vm594, %v593, %v591
        %v596 = vadd.s32 %v550, 4294967200
        %v597 = vperm.slane %v529, %v596
        %vm598 = vcmask 851712
        %v599 = vsel %vm598, %v597, %v595
        %v600 = vadd.s32 %v550, 4294967192
        %v601 = vperm.slane %v530, %v600
        %vm602 = vcmask 917312
        %v603 = vsel %vm602, %v601, %v599
        %v604 = vadd.s32 %v550, 4294967184
        %v605 = vperm.slane %v531, %v604
        %vm606 = vcmask 982912
        %v607 = vsel %vm606, %v605, %v603
        %v608 = vadd.s32 %v550, 4294967176
        %v609 = vperm.slane %v532, %v608
        %vm610 = vcmask 1048512
        %v611 = vsel %vm610, %v609, %v607
        %613 = vst [vmem:[%s255] sm:$0x1] %v611
        %s614 = sand.u32 %s100, 1
        %s615 = scalar_lea.sflag [#allocation4], %s614
        %s616 = sand.u32 %s100, 1
        %s617 = smul.addr %s616, 256
        %s618 = scalar_lea.vmem [#allocation8], %s617
        %s619 = sand.u32 %s126, 1
        %s620 = scalar_lea.sflag [#allocation10], %s619
        %s621 = sand.u32 %s126, 1
        %s622 = scalar_lea.vmem [#allocation9], %s621
        // Predicated region
        $region45: #{tpu_custom_call.1} parent=31 // pred_check
          %p623 = pneg %p110
        $region46: #{tpu_custom_call.1} parent=31 // pred_check_branch
          %625 = sbr.rel (%p623) target = $region48
        $region47: #{tpu_custom_call.1} parent=31 // pred_region
          %s626 = smul.u32 16, %s24
          %628 = vsyncadd %s615, 0
          %s629 = smul.addr %s626, 2
          %s630 = smul.addr %s629, 8
          %s631 = scalar_lea.hbm %s3, %s630
          %s632 = sshll.u32 %s618, 4
          %s633 = int_to_ptr.vmem [resolvable:$true] %s632
          %s634 = sshll.u32 %s631, 4
          %s635 = int_to_ptr.hbm [resolvable:$true] %s634
          %640 = dma.vmem_to_hbm [thread:$0]  %s633, 4096, %s635, %s615, 256, 256, 16
        $region48: #{tpu_custom_call.1} parent=31 // pred_fallthru
          _
        // Predicated region
        $region49: #{tpu_custom_call.1} parent=31 // pred_check
          %p641 = pneg %p136
        $region50: #{tpu_custom_call.1} parent=31 // pred_check_branch
          %643 = sbr.rel (%p641) target = $region52
        $region51: #{tpu_custom_call.1} parent=31 // pred_region
          %645 = vsyncadd %s620, 0
          %s646 = scalar_lea.hbm %s4, %s24
          %s648 = sshll.u32 %s622, 4
          %s649 = int_to_ptr.vmem [resolvable:$true] %s648
          %s650 = sshll.u32 %s646, 4
          %s651 = int_to_ptr.hbm [resolvable:$true] %s650
          %653 = dma.vmem_to_hbm [thread:$0]  %s649, 16, %s651, %s620
        $region52: #{tpu_custom_call.1} parent=31 // pred_fallthru
          _
      $region32: #{tpu_custom_call.1} parent=5 // pred_fallthru
        _
      %p654 = scmp.le.s32.totalorder 2, %s19
      // Predicated region
      $region53: #{tpu_custom_call.1} parent=5 // pred_check
        %p655 = pneg %p654
      $region54: #{tpu_custom_call.1} parent=5 // pred_check_branch
        %657 = sbr.rel (%p655) target = $region56
      $region55: #{tpu_custom_call.1} parent=5 // pred_region
        %s658 = ssub.s32 %s19, 2
        // Predicated region
        $region57: #{tpu_custom_call.1} parent=55 // pred_check
          %p659 = pneg %p116
        $region58: #{tpu_custom_call.1} parent=55 // pred_check_branch
          %661 = sbr.rel (%p659) target = $region60
        $region59: #{tpu_custom_call.1} parent=55 // pred_region
          %s662 = sand.u32 %s101, 1
          %s663 = scalar_lea.sflag [#allocation4], %s662
          %s664 = sand.u32 %s101, 1
          %s665 = smul.addr %s664, 256
          %s666 = scalar_lea.vmem [#allocation8], %s665
          %668 = dma.done %s663, 4096
        $region60: #{tpu_custom_call.1} parent=55 // pred_fallthru
          _
        // Predicated region
        $region61: #{tpu_custom_call.1} parent=55 // pred_check
          %p669 = pneg %p142
        $region62: #{tpu_custom_call.1} parent=55 // pred_check_branch
          %671 = sbr.rel (%p669) target = $region64
        $region63: #{tpu_custom_call.1} parent=55 // pred_region
          %s672 = sand.u32 %s127, 1
          %s673 = scalar_lea.sflag [#allocation10], %s672
          %s674 = sand.u32 %s127, 1
          %s675 = scalar_lea.vmem [#allocation9], %s674
          %677 = dma.done %s673, 16
        $region64: #{tpu_custom_call.1} parent=55 // pred_fallthru
          _
      $region56: #{tpu_custom_call.1} parent=5 // pred_fallthru
        _
    $region6: #{tpu_custom_call.1} parent=1 // loop_footer
      %s23 = sadd.s32 1, %s19
    $region7: #{tpu_custom_call.1} parent=1 // loop_footer_branch
      %18 = sbr.rel target = $region3
    $region8: #{tpu_custom_call.1} parent=1 // loop_exit
      _
    %678 = vsyncpa [#allocation3], 1
    %s679 = scalar_lea.sflag [#allocation3], 1
    %680 = vsyncpa %s679, 1
    %681 = vsyncpa [#allocation6], 1
    %682 = vsyncpa [#allocation4], 1
    %s683 = scalar_lea.sflag [#allocation4], 1
    %684 = vsyncpa %s683, 1
    %685 = vsyncpa [#allocation10], 1
    %s686 = scalar_lea.sflag [#allocation10], 1
    %687 = vsyncpa %s686, 1

</llo_original>
